<compile_context>
chip_gen: v6e
topology: v6e:2x2x1
jax: 0.10.0
libtpu: 0.0.40
codegen_flags: <defaults>
</compile_context>

<pallas_src>
import functools
from typing import NamedTuple, Tuple

import jax
import jax.numpy as jnp
from jax.experimental import pallas as pl
from jax.experimental.pallas import tpu as pltpu

BN_EPS = 1e-5
LANE = 128  # vreg lane width


class DecoderMeta(NamedTuple):
    latent: int
    hidden: int
    node_dim: int
    fold: int
    slab_w: int
    # per hidden block: (weight_row_offset, weight_in_rows, gamma_row, beta_row)
    block_offs: Tuple[Tuple[int, int, int, int], ...]
    r_wf: int
    r_bf: int
    n_rows: int


def _round8(x):
    return ((x + 7) // 8) * 8


def _choose_fold(latent, hidden, node_dim):
    """Largest lane-fold factor whose folded widths still fit in 128 lanes."""
    fold = 1
    for f in (2, 4):
        if f * max(latent, hidden) <= LANE and node_dim <= hidden:
            fold = f
    return fold


def prepare_params(params, node_dim):
    """Pack all parameters ONCE into a single (P, slab_w) f32 slab + static metadata.

    Called outside the per-call path (review item #1): the jitted forward never re-packs.
    Layout: block-diagonal (fold-replicated) weight tiles, lane-tiled gamma/beta/bias rows,
    every piece starting at an 8-row (sublane-aligned) offset.
    """
    *blocks_flat, wf, bf = params
    assert len(blocks_flat) % 3 == 0
    blocks = [tuple(blocks_flat[3 * i:3 * i + 3]) for i in range(len(blocks_flat) // 3)]
    latent = blocks[0][0].shape[0]
    hidden = blocks[0][0].shape[1]
    # TODO(synk): support node_dim > hidden (widen the head's per-group column count).
    assert node_dim <= hidden
    fold = _choose_fold(latent, hidden, node_dim)
    w_out = fold * hidden
    slab_w = max(fold * latent, w_out)

    eye = jnp.eye(fold, dtype=jnp.float32)

    def bdiag(w):  # (in, out) -> (fold*in, fold*out) block-diagonal
        return jnp.kron(eye, jnp.asarray(w, jnp.float32))

    def lane_tile(v):  # (1, d<=hidden) -> (1, fold*hidden), zero-padded per group
        v = jnp.asarray(v, jnp.float32).reshape(1, -1)
        v = jnp.pad(v, ((0, 0), (0, hidden - v.shape[1])))
        return jnp.tile(v, (1, fold))

    pieces = []
    off = 0
    block_offs = []
    for (w, g, b) in blocks:
        w_in = fold * w.shape[0]
        r_w = off
        pieces.append((r_w, bdiag(w)))
        off = _round8(off + w_in)
        r_g, r_b = off, off + 8
        pieces.append((r_g, lane_tile(g)))
        pieces.append((r_b, lane_tile(b)))
        off = r_b + 8
        block_offs.append((r_w, w_in, r_g, r_b))

    r_wf = off
    wf_pad = jnp.pad(jnp.asarray(wf, jnp.float32), ((0, 0), (0, hidden - node_dim)))
    pieces.append((r_wf, bdiag(wf_pad)))
    off = _round8(off + w_out)
    r_bf = off
    pieces.append((r_bf, lane_tile(bf)))
    n_rows = _round8(r_bf + 8)

    slab = jnp.zeros((n_rows, slab_w), jnp.float32)
    for r, a in pieces:
        slab = slab.at[r:r + a.shape[0], :a.shape[1]].set(a)

    meta = DecoderMeta(latent, hidden, node_dim, fold, slab_w,
                       tuple(block_offs), r_wf, r_bf, n_rows)
    return jax.device_put(slab), meta


def _make_kernel(meta: DecoderMeta, rows: int, total_rows: int):
    """Kernel closure with static slab offsets, static fold layout and static 1/R."""
    hidden, fold = meta.hidden, meta.fold
    w_out = fold * hidden
    inv_r = 1.0 / float(total_rows)  # BN stats are over ALL original rows

    def kernel(x_ref, p_ref, o_ref):
        h = x_ref[...]                                # (rows, fold*latent), lane-dense
        ones_r = jnp.ones((1, rows), jnp.float32)     # MXU row-reduce vector

        def hidden_block(h, r_w, w_in, r_g, r_b):
            w = p_ref[r_w:r_w + w_in, :w_out]
            g = p_ref[r_g:r_g + 1, :w_out]
            beta = p_ref[r_b:r_b + 1, :w_out]
            # Linear (no bias) + ReLU, block-diagonal over the fold lane groups.
            h = jnp.dot(h, w, preferred_element_type=jnp.float32)
            h = jnp.maximum(h, 0.0)
            # Single-pass batch stats: row reductions offloaded to the MXU.
            s1 = jnp.dot(ones_r, h, preferred_element_type=jnp.float32)        # sum
            s2 = jnp.dot(ones_r, h * h, preferred_element_type=jnp.float32)    # sum sq
            # Butterfly all-reduce across the `fold` lane groups (XLU rolls, free slot).
            shift = w_out // 2
            while shift >= hidden:
                s1 = s1 + pltpu.roll(s1, shift, axis=1)
                s2 = s2 + pltpu.roll(s2, shift, axis=1)
                shift //= 2
            mean = s1 * inv_r
            var = jnp.maximum(s2 * inv_r - mean * mean, 0.0)  # clamp single-pass variance
            # Fused BN affine: (h - mean)/sqrt(var+eps)*g + beta == h*scale + shift_v
            scale = g * jax.lax.rsqrt(var + BN_EPS)
            shift_v = beta - mean * scale
            return h * scale + shift_v

        for (r_w, w_in, r_g, r_b) in meta.block_offs:
            h = hidden_block(h, r_w, w_in, r_g, r_b)

        # Final Linear with bias; block-diagonal head keeps the store lane-dense.
        wf = p_ref[meta.r_wf:meta.r_wf + w_out, :w_out]
        bf = p_ref[meta.r_bf:meta.r_bf + 1, :w_out]
        o_ref[...] = (jnp.dot(h, wf, preferred_element_type=jnp.float32) + bf
                      ).astype(o_ref.dtype)

    return kernel


@functools.partial(jax.jit, static_argnames=("meta",))
def node_decoder_forward(x, slab, meta: DecoderMeta):
    """x: (b, s, n, latent) or (b, n, latent). Returns same rank with last dim node_dim."""
    is_sequence = x.ndim == 4
    if not is_sequence:
        x = x[:, None]
    b, s, n, latent = x.shape
    assert latent == meta.latent
    R = b * s * n
    fold = meta.fold
    # TODO(synk): pad rows + mask the BN stats when R is not divisible by the fold factor.
    assert R % fold == 0, "row count must be divisible by the lane-fold factor"
    rows = R // fold
    w_out = fold * meta.hidden

    x_fold = x.reshape(rows, fold * latent)  # contiguous lane-fold: 4 rows per vreg row

    # Grid-less full-array kernel — guarded so it never silently outgrows VMEM (v7x: 64MiB).
    approx_vmem = 4 * (rows * fold * latent + 3 * rows * w_out + meta.n_rows * meta.slab_w)
    assert approx_vmem < 24 * 1024 * 1024, "TODO(synk): switch to R-tiled two-phase-BN grid"

    vmem_full = pl.BlockSpec(memory_space=pltpu.MemorySpace.VMEM)
    out_fold = pl.pallas_call(
        _make_kernel(meta, rows, R),
        out_shape=jax.ShapeDtypeStruct((rows, w_out), jnp.float32),
        in_specs=[vmem_full, vmem_full],
        out_specs=vmem_full,
    )(x_fold, slab)

    # Contiguous un-fold + slice of the lane-dense padded slab (cheap at these sizes).
    out = out_fold.reshape(R, meta.hidden)[:, :meta.node_dim]
    if is_sequence:
        return out.reshape(b, s, n, meta.node_dim)
    return out.reshape(b, n, meta.node_dim)


def init_params(key, node_latent_dim, hidden_dim, node_dim, num_layers):
    """Deterministic synthetic parameters matching NodeDecoder.__init__ shapes.

    Weights are stored pre-transposed as (in_dim, out_dim) so the kernel does x @ W.
    gamma/beta follow PyTorch BatchNorm1d defaults (ones / zeros), shaped (1, H).
    """
    keys = jax.random.split(key, num_layers + 1)
    params = []
    in_dim = node_latent_dim
    for i in range(num_layers - 1):
        w = jax.random.normal(keys[i], (in_dim, hidden_dim), jnp.float32) * 0.1
        params += [w,
                   jnp.ones((1, hidden_dim), jnp.float32),
                   jnp.zeros((1, hidden_dim), jnp.float32)]
        in_dim = hidden_dim
    wf = jax.random.normal(keys[-2], (hidden_dim, node_dim), jnp.float32) * 0.1
    bf = jax.random.normal(keys[-1], (1, node_dim), jnp.float32) * 0.1
    return tuple(params) + (wf, bf)


def reference_forward(x, params, node_dim):
    """Pure-JAX reference mirroring the PyTorch module (training-mode BN, two-pass var)."""
    is_sequence = x.ndim == 4
    if not is_sequence:
        x = x[:, None]
    b, s, n, _ = x.shape
    h = x.reshape(b * s * n, -1)
    *blocks, wf, bf = params
    for i in range(0, len(blocks), 3):
        w, g, bb = blocks[i], blocks[i + 1], blocks[i + 2]
        h = jnp.maximum(h @ w, 0.0)
        mean = jnp.mean(h, axis=0, keepdims=True)
        var = jnp.mean((h - mean) ** 2, axis=0, keepdims=True)
        h = (h - mean) / jnp.sqrt(var + BN_EPS) * g + bb
    out = h @ wf + bf
    if is_sequence:
        return out.reshape(b, s, n, node_dim)
    return out.reshape(b, n, node_dim)


if __name__ == "__main__":
    node_latent_dim = 32
    hidden_dim = 32
    node_dim = 4
    num_layers = 3
    batch, seq, node_cnt = 2, 8, 16

    key = jax.random.PRNGKey(0)
    kx, kp = jax.random.split(key)
    x = jax.random.normal(kx, (batch, seq, node_cnt, node_latent_dim), jnp.float32)
    params = init_params(kp, node_latent_dim, hidden_dim, node_dim, num_layers)

    # Pack the parameter slab ONCE, outside the per-call hot path.
    slab, meta = prepare_params(params, node_dim)
    slab = jax.block_until_ready(slab)

    out = jax.block_until_ready(node_decoder_forward(x, slab, meta))
    ref = reference_forward(x, params, node_dim)
    assert out.shape == (batch, seq, node_cnt, node_dim), out.shape
    assert jnp.allclose(out, ref, atol=1e-4, rtol=1e-4), "mismatch vs pure-JAX reference"

    # Also exercise the 3-D (no sequence) path, as the PyTorch forward supports it.
    x3 = x[:, 0]
    out3 = jax.block_until_ready(node_decoder_forward(x3, slab, meta))
    ref3 = reference_forward(x3, params, node_dim)
    assert out3.shape == (batch, node_cnt, node_dim), out3.shape
    assert jnp.allclose(out3, ref3, atol=1e-4, rtol=1e-4), "mismatch (3-D path)"

    print("KERNEL_OK")
</pallas_src>

<mosaic_0001>
module attributes {stable_mosaic.version = 11 : i64} {
  func.func @kernel(%arg0: memref<64x128xf32, #tpu.memory_space<vmem>>, %arg1: memref<424x128xf32, #tpu.memory_space<vmem>>, %arg2: memref<64x128xf32, #tpu.memory_space<vmem>>) attributes {dimension_semantics = [], scalar_prefetch = 0 : i64, scratch_operands = 0 : i64, tpu.core_type = #tpu.core_type<tc>} {
    %c0 = arith.constant 0 : index
    %c0_0 = arith.constant 0 : index
    %0 = vector.load %arg0[%c0, %c0_0] : memref<64x128xf32, #tpu.memory_space<vmem>>, vector<64x128xf32>
    %cst = arith.constant 1.000000e+00 : f32
    %1 = vector.broadcast %cst : f32 to vector<1x64xf32>
    %c0_1 = arith.constant 0 : index
    %c0_2 = arith.constant 0 : index
    %2 = vector.load %arg1[%c0_1, %c0_2] : memref<424x128xf32, #tpu.memory_space<vmem>>, vector<128x128xf32>
    %c128 = arith.constant 128 : index
    %c0_3 = arith.constant 0 : index
    %3 = vector.load %arg1[%c128, %c0_3] : memref<424x128xf32, #tpu.memory_space<vmem>>, vector<1x128xf32>
    %c136 = arith.constant 136 : index
    %c0_4 = arith.constant 0 : index
    %4 = vector.load %arg1[%c136, %c0_4] : memref<424x128xf32, #tpu.memory_space<vmem>>, vector<1x128xf32>
    %cst_5 = arith.constant dense<0.000000e+00> : vector<64x128xf32>
    %5 = tpu.matmul %0, %2, %cst_5 {dimension_numbers = #tpu.dot_dimension_numbers<[1], [0], [0], [1], [0, 0, 1, 1], [], []>} : vector<64x128xf32>, vector<128x128xf32>, vector<64x128xf32> -> vector<64x128xf32>
    %cst_6 = arith.constant 0.000000e+00 : f32
    %6 = vector.broadcast %cst_6 : f32 to vector<64x128xf32>
    %7 = arith.maximumf %5, %6 : vector<64x128xf32>
    %cst_7 = arith.constant dense<0.000000e+00> : vector<1x128xf32>
    %8 = tpu.matmul %1, %7, %cst_7 {dimension_numbers = #tpu.dot_dimension_numbers<[1], [0], [0], [1], [0, 0, 1, 1], [], []>} : vector<1x64xf32>, vector<64x128xf32>, vector<1x128xf32> -> vector<1x128xf32>
    %9 = arith.mulf %7, %7 : vector<64x128xf32>
    %cst_8 = arith.constant dense<0.000000e+00> : vector<1x128xf32>
    %10 = tpu.matmul %1, %9, %cst_8 {dimension_numbers = #tpu.dot_dimension_numbers<[1], [0], [0], [1], [0, 0, 1, 1], [], []>} : vector<1x64xf32>, vector<64x128xf32>, vector<1x128xf32> -> vector<1x128xf32>
    %c64_i32 = arith.constant 64 : i32
    %11 = tpu.dynamic_rotate %8 by %c64_i32 dim 1 : vector<1x128xf32>, i32 -> vector<1x128xf32>
    %12 = arith.addf %8, %11 : vector<1x128xf32>
    %c64_i32_9 = arith.constant 64 : i32
    %13 = tpu.dynamic_rotate %10 by %c64_i32_9 dim 1 : vector<1x128xf32>, i32 -> vector<1x128xf32>
    %14 = arith.addf %10, %13 : vector<1x128xf32>
    %c32_i32 = arith.constant 32 : i32
    %15 = tpu.dynamic_rotate %12 by %c32_i32 dim 1 : vector<1x128xf32>, i32 -> vector<1x128xf32>
    %16 = arith.addf %12, %15 : vector<1x128xf32>
    %c32_i32_10 = arith.constant 32 : i32
    %17 = tpu.dynamic_rotate %14 by %c32_i32_10 dim 1 : vector<1x128xf32>, i32 -> vector<1x128xf32>
    %18 = arith.addf %14, %17 : vector<1x128xf32>
    %cst_11 = arith.constant 3.906250e-03 : f32
    %19 = vector.broadcast %cst_11 : f32 to vector<1x128xf32>
    %20 = arith.mulf %16, %19 : vector<1x128xf32>
    %cst_12 = arith.constant 3.906250e-03 : f32
    %21 = vector.broadcast %cst_12 : f32 to vector<1x128xf32>
    %22 = arith.mulf %18, %21 : vector<1x128xf32>
    %23 = arith.mulf %20, %20 : vector<1x128xf32>
    %24 = arith.subf %22, %23 : vector<1x128xf32>
    %cst_13 = arith.constant 0.000000e+00 : f32
    %25 = vector.broadcast %cst_13 : f32 to vector<1x128xf32>
    %26 = arith.maximumf %24, %25 : vector<1x128xf32>
    %cst_14 = arith.constant 9.99999974E-6 : f32
    %27 = vector.broadcast %cst_14 : f32 to vector<1x128xf32>
    %28 = arith.addf %26, %27 : vector<1x128xf32>
    %29 = math.rsqrt %28 : vector<1x128xf32>
    %30 = arith.mulf %3, %29 : vector<1x128xf32>
    %31 = arith.mulf %20, %30 : vector<1x128xf32>
    %32 = arith.subf %4, %31 : vector<1x128xf32>
    %33 = vector.broadcast %30 : vector<1x128xf32> to vector<64x128xf32>
    %34 = arith.mulf %7, %33 : vector<64x128xf32>
    %35 = vector.broadcast %32 : vector<1x128xf32> to vector<64x128xf32>
    %36 = arith.addf %34, %35 : vector<64x128xf32>
    %c144 = arith.constant 144 : index
    %c0_15 = arith.constant 0 : index
    %37 = vector.load %arg1[%c144, %c0_15] : memref<424x128xf32, #tpu.memory_space<vmem>>, vector<128x128xf32>
    %c272 = arith.constant 272 : index
    %c0_16 = arith.constant 0 : index
    %38 = vector.load %arg1[%c272, %c0_16] : memref<424x128xf32, #tpu.memory_space<vmem>>, vector<1x128xf32>
    %c280 = arith.constant 280 : index
    %c0_17 = arith.constant 0 : index
    %39 = vector.load %arg1[%c280, %c0_17] : memref<424x128xf32, #tpu.memory_space<vmem>>, vector<1x128xf32>
    %cst_18 = arith.constant dense<0.000000e+00> : vector<64x128xf32>
    %40 = tpu.matmul %36, %37, %cst_18 {dimension_numbers = #tpu.dot_dimension_numbers<[1], [0], [0], [1], [0, 0, 1, 1], [], []>} : vector<64x128xf32>, vector<128x128xf32>, vector<64x128xf32> -> vector<64x128xf32>
    %cst_19 = arith.constant 0.000000e+00 : f32
    %41 = vector.broadcast %cst_19 : f32 to vector<64x128xf32>
    %42 = arith.maximumf %40, %41 : vector<64x128xf32>
    %cst_20 = arith.constant dense<0.000000e+00> : vector<1x128xf32>
    %43 = tpu.matmul %1, %42, %cst_20 {dimension_numbers = #tpu.dot_dimension_numbers<[1], [0], [0], [1], [0, 0, 1, 1], [], []>} : vector<1x64xf32>, vector<64x128xf32>, vector<1x128xf32> -> vector<1x128xf32>
    %44 = arith.mulf %42, %42 : vector<64x128xf32>
    %cst_21 = arith.constant dense<0.000000e+00> : vector<1x128xf32>
    %45 = tpu.matmul %1, %44, %cst_21 {dimension_numbers = #tpu.dot_dimension_numbers<[1], [0], [0], [1], [0, 0, 1, 1], [], []>} : vector<1x64xf32>, vector<64x128xf32>, vector<1x128xf32> -> vector<1x128xf32>
    %c64_i32_22 = arith.constant 64 : i32
    %46 = tpu.dynamic_rotate %43 by %c64_i32_22 dim 1 : vector<1x128xf32>, i32 -> vector<1x128xf32>
    %47 = arith.addf %43, %46 : vector<1x128xf32>
    %c64_i32_23 = arith.constant 64 : i32
    %48 = tpu.dynamic_rotate %45 by %c64_i32_23 dim 1 : vector<1x128xf32>, i32 -> vector<1x128xf32>
    %49 = arith.addf %45, %48 : vector<1x128xf32>
    %c32_i32_24 = arith.constant 32 : i32
    %50 = tpu.dynamic_rotate %47 by %c32_i32_24 dim 1 : vector<1x128xf32>, i32 -> vector<1x128xf32>
    %51 = arith.addf %47, %50 : vector<1x128xf32>
    %c32_i32_25 = arith.constant 32 : i32
    %52 = tpu.dynamic_rotate %49 by %c32_i32_25 dim 1 : vector<1x128xf32>, i32 -> vector<1x128xf32>
    %53 = arith.addf %49, %52 : vector<1x128xf32>
    %cst_26 = arith.constant 3.906250e-03 : f32
    %54 = vector.broadcast %cst_26 : f32 to vector<1x128xf32>
    %55 = arith.mulf %51, %54 : vector<1x128xf32>
    %cst_27 = arith.constant 3.906250e-03 : f32
    %56 = vector.broadcast %cst_27 : f32 to vector<1x128xf32>
    %57 = arith.mulf %53, %56 : vector<1x128xf32>
    %58 = arith.mulf %55, %55 : vector<1x128xf32>
    %59 = arith.subf %57, %58 : vector<1x128xf32>
    %cst_28 = arith.constant 0.000000e+00 : f32
    %60 = vector.broadcast %cst_28 : f32 to vector<1x128xf32>
    %61 = arith.maximumf %59, %60 : vector<1x128xf32>
    %cst_29 = arith.constant 9.99999974E-6 : f32
    %62 = vector.broadcast %cst_29 : f32 to vector<1x128xf32>
    %63 = arith.addf %61, %62 : vector<1x128xf32>
    %64 = math.rsqrt %63 : vector<1x128xf32>
    %65 = arith.mulf %38, %64 : vector<1x128xf32>
    %66 = arith.mulf %55, %65 : vector<1x128xf32>
    %67 = arith.subf %39, %66 : vector<1x128xf32>
    %68 = vector.broadcast %65 : vector<1x128xf32> to vector<64x128xf32>
    %69 = arith.mulf %42, %68 : vector<64x128xf32>
    %70 = vector.broadcast %67 : vector<1x128xf32> to vector<64x128xf32>
    %71 = arith.addf %69, %70 : vector<64x128xf32>
    %c288 = arith.constant 288 : index
    %c0_30 = arith.constant 0 : index
    %72 = vector.load %arg1[%c288, %c0_30] : memref<424x128xf32, #tpu.memory_space<vmem>>, vector<128x128xf32>
    %c416 = arith.constant 416 : index
    %c0_31 = arith.constant 0 : index
    %73 = vector.load %arg1[%c416, %c0_31] : memref<424x128xf32, #tpu.memory_space<vmem>>, vector<1x128xf32>
    %cst_32 = arith.constant dense<0.000000e+00> : vector<64x128xf32>
    %74 = tpu.matmul %71, %72, %cst_32 {dimension_numbers = #tpu.dot_dimension_numbers<[1], [0], [0], [1], [0, 0, 1, 1], [], []>} : vector<64x128xf32>, vector<128x128xf32>, vector<64x128xf32> -> vector<64x128xf32>
    %75 = vector.broadcast %73 : vector<1x128xf32> to vector<64x128xf32>
    %76 = arith.addf %74, %75 : vector<64x128xf32>
    %c0_33 = arith.constant 0 : index
    %c0_34 = arith.constant 0 : index
    %77 = vector.load %arg2[%c0_33, %c0_34] : memref<64x128xf32, #tpu.memory_space<vmem>>, vector<64x128xf32>
    tpu.vector_store %arg2[%c0_33, %c0_34], %76 {strides = array<i32>} : memref<64x128xf32, #tpu.memory_space<vmem>>, vector<64x128xf32>,
    return
  }
}

</mosaic_0001>

<llo_original>
// kernel: node_decoder_forward.1
$region0: #{node_decoder_forward.1}
  #allocation0 [shape = 'u32[]', space=smem, size = 0x4, offset = 0x4, fixed_abs, tag = 'smem constant byte address 0x4 - core index']
  #allocation1 [shape = 'u32[144,128]{1,0:T(1,128)}', space=vmem, size = 0x12000, scoped, tag = 'internal scratch']
  %s0 = inlined_call_operand.vmem [shape: f32[64,128], index: 0, kind: input, shape index: {}]
  %s1 = inlined_call_operand.hbm [shape: f32[424,128], index: 1, kind: input, shape index: {}]
  %s2 = inlined_call_operand.vmem [shape: f32[64,128], index: 2, kind: output, shape index: {}]
  %s3 = sld [smem:[#allocation0]]
  $region22: #{node_decoder_forward.1} parent=0
    _
  %s5 = ssub.s32 1, %s3
  %s6 = scalar_select 0, %s5, %s3
  $region1: #{node_decoder_forward.1} parent=0
    #allocation2 [shape = 'u8[217088]{0}', space=vmem, size = 0x35000, scoped, tag = 'input window, operand 1, single buffered']
    #allocation3 [shape = 's32[1]{0}', space=sflag, size = 0x4, scoped, tag = 'scoped memory for node_decoder_forward.1']
    %7 = vsyncpa [#allocation3], 0
    // Predicated region
    $region2: #{node_decoder_forward.1} parent=1 // pred_check
      _
    $region3: #{node_decoder_forward.1} parent=1 // pred_check_branch
      %9 = sbr.rel (0) target = $region5
    $region4: #{node_decoder_forward.1} parent=1 // pred_region
      _
    $region5: #{node_decoder_forward.1} parent=1 // pred_fallthru
      _
    // Predicated region
    $region6: #{node_decoder_forward.1} parent=1 // pred_check
      _
    $region7: #{node_decoder_forward.1} parent=1 // pred_check_branch
      %11 = sbr.rel (0) target = $region9
    $region8: #{node_decoder_forward.1} parent=1 // pred_region
      %s13 = ssub.s32 6784, 6784
      %14 = vsyncadd [#allocation3], %s13
      %s15 = sshll.u32 [#allocation2], 4
      %s16 = int_to_ptr.vmem [resolvable:$true] %s15
      %21 = dma.hbm_to_vmem [thread:$0]  %s1, 6784, %s16, [#allocation3], 128, 128, 8
    $region9: #{node_decoder_forward.1} parent=1 // pred_fallthru
      _
    // Predicated region
    $region10: #{node_decoder_forward.1} parent=1 // pred_check
      _
    $region11: #{node_decoder_forward.1} parent=1 // pred_check_branch
      %23 = sbr.rel (0) target = $region13
    $region12: #{node_decoder_forward.1} parent=1 // pred_region
      %24 = dma.done [#allocation3], 6784
    $region13: #{node_decoder_forward.1} parent=1 // pred_fallthru
      _
    %v25 = vld [vmem:[%s0] sm:$0xff]
    %v26 = vld [vmem:[%s0 + $0x8] sm:$0xff]
    %v27 = vld [vmem:[%s0 + $0x10] sm:$0xff]
    %v28 = vld [vmem:[%s0 + $0x18] sm:$0xff]
    %v29 = vld [vmem:[%s0 + $0x20] sm:$0xff]
    %v30 = vld [vmem:[%s0 + $0x28] sm:$0xff]
    %v31 = vld [vmem:[%s0 + $0x30] sm:$0xff]
    %v32 = vld [vmem:[%s0 + $0x38] sm:$0xff]
    %v33 = vld [vmem:[#allocation2] sm:$0xff]
    %v34 = vld [vmem:[#allocation2 + $0x8] sm:$0xff]
    %v35 = vld [vmem:[#allocation2 + $0x10] sm:$0xff]
    %v36 = vld [vmem:[#allocation2 + $0x18] sm:$0xff]
    %v37 = vld [vmem:[#allocation2 + $0x20] sm:$0xff]
    %v38 = vld [vmem:[#allocation2 + $0x28] sm:$0xff]
    %v39 = vld [vmem:[#allocation2 + $0x30] sm:$0xff]
    %v40 = vld [vmem:[#allocation2 + $0x38] sm:$0xff]
    %v41 = vld [vmem:[#allocation2 + $0x40] sm:$0xff]
    %v42 = vld [vmem:[#allocation2 + $0x48] sm:$0xff]
    %v43 = vld [vmem:[#allocation2 + $0x50] sm:$0xff]
    %v44 = vld [vmem:[#allocation2 + $0x58] sm:$0xff]
    %v45 = vld [vmem:[#allocation2 + $0x60] sm:$0xff]
    %v46 = vld [vmem:[#allocation2 + $0x68] sm:$0xff]
    %v47 = vld [vmem:[#allocation2 + $0x70] sm:$0xff]
    %v48 = vld [vmem:[#allocation2 + $0x78] sm:$0xff]
    %v49 = vld [vmem:[#allocation2 + $0x80] sm:$0x1]
    %v50 = vld [vmem:[#allocation2 + $0x88] sm:$0x1]
    %51 = vmatprep.subr.mxu0 0.0
    %52 = vmatpush1.msra.mxu0 %v48
    %53 = vmatprep.subr.mxu0 0.0
    %54 = vmatpush1.msra.mxu0 %v47
    %55 = vmatprep.subr.mxu0 0.0
    %56 = vmatpush1.msra.mxu0 %v46
    %57 = vmatprep.subr.mxu0 0.0
    %58 = vmatpush1.msra.mxu0 %v45
    %59 = vmatprep.subr.mxu0 0.0
    %60 = vmatpush1.msra.mxu0 %v44
    %61 = vmatprep.subr.mxu0 0.0
    %62 = vmatpush1.msra.mxu0 %v43
    %63 = vmatprep.subr.mxu0 0.0
    %64 = vmatpush1.msra.mxu0 %v42
    %65 = vmatprep.subr.mxu0 0.0
    %66 = vmatpush1.msra.mxu0 %v41
    %67 = vmatprep.subr.mxu0 0.0
    %68 = vmatpush1.msra.mxu0 %v40
    %69 = vmatprep.subr.mxu0 0.0
    %70 = vmatpush1.msra.mxu0 %v39
    %71 = vmatprep.subr.mxu0 0.0
    %72 = vmatpush1.msra.mxu0 %v38
    %73 = vmatprep.subr.mxu0 0.0
    %74 = vmatpush1.msra.mxu0 %v37
    %75 = vmatprep.subr.mxu0 0.0
    %76 = vmatpush1.msra.mxu0 %v36
    %77 = vmatprep.subr.mxu0 0.0
    %78 = vmatpush1.msra.mxu0 %v35
    %79 = vmatprep.subr.mxu0 0.0
    %80 = vmatpush1.msra.mxu0 %v34
    %81 = vmatprep.subr.mxu0 0.0
    %82 = vmatpush1.msra.mxu0 %v33
    %83 = vmatprep.subr.mxu0 0.0
    %84 = vmatpush2.msra.mxu0 0.0
    %85 = vmatprep.subr.mxu0 0.0
    %86 = vmatpush2.msra.mxu0 0.0
    %87 = vmatprep.subr.mxu0 0.0
    %88 = vmatpush2.msra.mxu0 0.0
    %89 = vmatprep.subr.mxu0 0.0
    %90 = vmatpush2.msra.mxu0 0.0
    %91 = vmatprep.subr.mxu0 0.0
    %92 = vmatpush2.msra.mxu0 0.0
    %93 = vmatprep.subr.mxu0 0.0
    %94 = vmatpush2.msra.mxu0 0.0
    %95 = vmatprep.subr.mxu0 0.0
    %96 = vmatpush2.msra.mxu0 0.0
    %97 = vmatprep.subr.mxu0 0.0
    %98 = vmatpush2.msra.mxu0 0.0
    %99 = vmatprep.subr.mxu0 0.0
    %100 = vmatpush2.msra.mxu0 0.0
    %101 = vmatprep.subr.mxu0 0.0
    %102 = vmatpush2.msra.mxu0 0.0
    %103 = vmatprep.subr.mxu0 0.0
    %104 = vmatpush2.msra.mxu0 0.0
    %105 = vmatprep.subr.mxu0 0.0
    %106 = vmatpush2.msra.mxu0 0.0
    %107 = vmatprep.subr.mxu0 0.0
    %108 = vmatpush2.msra.mxu0 0.0
    %109 = vmatprep.subr.mxu0 0.0
    %110 = vmatpush2.msra.mxu0 0.0
    %111 = vmatprep.subr.mxu0 0.0
    %112 = vmatpush2.msra.mxu0 0.0
    %113 = vmatprep.subr.mxu0 0.0
    %114 = vmatpush2.msra.mxu0 0.0
    %115 = vmatprep.mubr.f32.mxu0 0.0
    %116 = vmatmul.mubr.f32.gmra.mxu0 %v25
    %v117 = vpop.f32.mrf.mxu0
    %v118 = vadd.f32 0.0, %v117
    %v119 = vpop.f32.mrf.mxu0
    %120 = vmatprep.mubr.f32.mxu0 0.0
    %121 = vmatmul.mubr.f32.gmra.mxu0 %v26
    %v122 = vpop.f32.mrf.mxu0
    %v123 = vadd.f32 0.0, %v122
    %v124 = vpop.f32.mrf.mxu0
    %125 = vmatprep.mubr.f32.mxu0 0.0
    %126 = vmatmul.mubr.f32.gmra.mxu0 %v27
    %v127 = vpop.f32.mrf.mxu0
    %v128 = vadd.f32 0.0, %v127
    %v129 = vpop.f32.mrf.mxu0
    %130 = vmatprep.mubr.f32.mxu0 0.0
    %131 = vmatmul.mubr.f32.gmra.mxu0 %v28
    %v132 = vpop.f32.mrf.mxu0
    %v133 = vadd.f32 0.0, %v132
    %v134 = vpop.f32.mrf.mxu0
    %135 = vmatprep.mubr.f32.mxu0 0.0
    %136 = vmatmul.mubr.f32.gmra.mxu0 %v29
    %v137 = vpop.f32.mrf.mxu0
    %v138 = vadd.f32 0.0, %v137
    %v139 = vpop.f32.mrf.mxu0
    %140 = vmatprep.mubr.f32.mxu0 0.0
    %141 = vmatmul.mubr.f32.gmra.mxu0 %v30
    %v142 = vpop.f32.mrf.mxu0
    %v143 = vadd.f32 0.0, %v142
    %v144 = vpop.f32.mrf.mxu0
    %145 = vmatprep.mubr.f32.mxu0 0.0
    %146 = vmatmul.mubr.f32.gmra.mxu0 %v31
    %v147 = vpop.f32.mrf.mxu0
    %v148 = vadd.f32 0.0, %v147
    %v149 = vpop.f32.mrf.mxu0
    %150 = vmatprep.mubr.f32.mxu0 0.0
    %151 = vmatmul.mubr.f32.gmra.mxu0 %v32
    %v152 = vpop.f32.mrf.mxu0
    %v153 = vadd.f32 0.0, %v152
    %v154 = vpop.f32.mrf.mxu0
    %155 = vdwg.mxu0
    %v156 = vmax.f32 %v118, 0.0
    %v157 = vmax.f32 %v123, 0.0
    %v158 = vmax.f32 %v128, 0.0
    %v159 = vmax.f32 %v133, 0.0
    %v160 = vmax.f32 %v138, 0.0
    %v161 = vmax.f32 %v143, 0.0
    %v162 = vmax.f32 %v148, 0.0
    %v163 = vmax.f32 %v153, 0.0
    %vm164 = vcmask 523264
    %v166 = vsel %vm164, 1.0, 0
    %168 = vmatprep.subr.mxu0 0.0
    %169 = vmatpush1.msra.mxu0 0.0
    %170 = vmatprep.subr.mxu0 0.0
    %171 = vmatpush1.msra.mxu0 0.0
    %172 = vmatprep.subr.mxu0 0.0
    %173 = vmatpush1.msra.mxu0 0.0
    %174 = vmatprep.subr.mxu0 0.0
    %175 = vmatpush1.msra.mxu0 0.0
    %176 = vmatprep.subr.mxu0 0.0
    %177 = vmatpush1.msra.mxu0 0.0
    %178 = vmatprep.subr.mxu0 0.0
    %179 = vmatpush1.msra.mxu0 0.0
    %180 = vmatprep.subr.mxu0 0.0
    %181 = vmatpush1.msra.mxu0 0.0
    %182 = vmatprep.subr.mxu0 0.0
    %183 = vmatpush1.msra.mxu0 0.0
    %184 = vmatprep.subr.mxu0 0.0
    %185 = vmatpush1.msra.mxu0 %v163
    %186 = vmatprep.subr.mxu0 0.0
    %187 = vmatpush1.msra.mxu0 %v162
    %188 = vmatprep.subr.mxu0 0.0
    %189 = vmatpush1.msra.mxu0 %v161
    %190 = vmatprep.subr.mxu0 0.0
    %191 = vmatpush1.msra.mxu0 %v160
    %192 = vmatprep.subr.mxu0 0.0
    %193 = vmatpush1.msra.mxu0 %v159
    %194 = vmatprep.subr.mxu0 0.0
    %195 = vmatpush1.msra.mxu0 %v158
    %196 = vmatprep.subr.mxu0 0.0
    %197 = vmatpush1.msra.mxu0 %v157
    %198 = vmatprep.subr.mxu0 0.0
    %199 = vmatpush1.msra.mxu0 %v156
    %200 = vmatprep.subr.mxu0 0.0
    %201 = vmatpush2.msra.mxu0 0.0
    %202 = vmatprep.subr.mxu0 0.0
    %203 = vmatpush2.msra.mxu0 0.0
    %204 = vmatprep.subr.mxu0 0.0
    %205 = vmatpush2.msra.mxu0 0.0
    %206 = vmatprep.subr.mxu0 0.0
    %207 = vmatpush2.msra.mxu0 0.0
    %208 = vmatprep.subr.mxu0 0.0
    %209 = vmatpush2.msra.mxu0 0.0
    %210 = vmatprep.subr.mxu0 0.0
    %211 = vmatpush2.msra.mxu0 0.0
    %212 = vmatprep.subr.mxu0 0.0
    %213 = vmatpush2.msra.mxu0 0.0
    %214 = vmatprep.subr.mxu0 0.0
    %215 = vmatpush2.msra.mxu0 0.0
    %216 = vmatprep.subr.mxu0 0.0
    %217 = vmatpush2.msra.mxu0 0.0
    %218 = vmatprep.subr.mxu0 0.0
    %219 = vmatpush2.msra.mxu0 0.0
    %220 = vmatprep.subr.mxu0 0.0
    %221 = vmatpush2.msra.mxu0 0.0
    %222 = vmatprep.subr.mxu0 0.0
    %223 = vmatpush2.msra.mxu0 0.0
    %224 = vmatprep.subr.mxu0 0.0
    %225 = vmatpush2.msra.mxu0 0.0
    %226 = vmatprep.subr.mxu0 0.0
    %227 = vmatpush2.msra.mxu0 0.0
    %228 = vmatprep.subr.mxu0 0.0
    %229 = vmatpush2.msra.mxu0 0.0
    %230 = vmatprep.subr.mxu0 0.0
    %231 = vmatpush2.msra.mxu0 0.0
    %232 = vmatprep.mubr.f32.mxu0 0.0
    %233 = vmatmul.mubr.f32.gmra.mxu0 %v166
    %v234 = vpop.f32.mrf.mxu0
    %v235 = vadd.f32 0.0, %v234
    %v236 = vpop.f32.mrf.mxu0
    %237 = vdwg.mxu0
    %v238 = vmul.f32 %v156, %v156
    %v239 = vmul.f32 %v157, %v157
    %v240 = vmul.f32 %v158, %v158
    %v241 = vmul.f32 %v159, %v159
    %v242 = vmul.f32 %v160, %v160
    %v243 = vmul.f32 %v161, %v161
    %v244 = vmul.f32 %v162, %v162
    %v245 = vmul.f32 %v163, %v163
    %246 = vmatprep.subr.mxu0 0.0
    %247 = vmatpush1.msra.mxu0 0.0
    %248 = vmatprep.subr.mxu0 0.0
    %249 = vmatpush1.msra.mxu0 0.0
    %250 = vmatprep.subr.mxu0 0.0
    %251 = vmatpush1.msra.mxu0 0.0
    %252 = vmatprep.subr.mxu0 0.0
    %253 = vmatpush1.msra.mxu0 0.0
    %254 = vmatprep.subr.mxu0 0.0
    %255 = vmatpush1.msra.mxu0 0.0
    %256 = vmatprep.subr.mxu0 0.0
    %257 = vmatpush1.msra.mxu0 0.0
    %258 = vmatprep.subr.mxu0 0.0
    %259 = vmatpush1.msra.mxu0 0.0
    %260 = vmatprep.subr.mxu0 0.0
    %261 = vmatpush1.msra.mxu0 0.0
    %262 = vmatprep.subr.mxu0 0.0
    %263 = vmatpush1.msra.mxu0 %v245
    %264 = vmatprep.subr.mxu0 0.0
    %265 = vmatpush1.msra.mxu0 %v244
    %266 = vmatprep.subr.mxu0 0.0
    %267 = vmatpush1.msra.mxu0 %v243
    %268 = vmatprep.subr.mxu0 0.0
    %269 = vmatpush1.msra.mxu0 %v242
    %270 = vmatprep.subr.mxu0 0.0
    %271 = vmatpush1.msra.mxu0 %v241
    %272 = vmatprep.subr.mxu0 0.0
    %273 = vmatpush1.msra.mxu0 %v240
    %274 = vmatprep.subr.mxu0 0.0
    %275 = vmatpush1.msra.mxu0 %v239
    %276 = vmatprep.subr.mxu0 0.0
    %277 = vmatpush1.msra.mxu0 %v238
    %278 = vmatprep.subr.mxu0 0.0
    %279 = vmatpush2.msra.mxu0 0.0
    %280 = vmatprep.subr.mxu0 0.0
    %281 = vmatpush2.msra.mxu0 0.0
    %282 = vmatprep.subr.mxu0 0.0
    %283 = vmatpush2.msra.mxu0 0.0
    %284 = vmatprep.subr.mxu0 0.0
    %285 = vmatpush2.msra.mxu0 0.0
    %286 = vmatprep.subr.mxu0 0.0
    %287 = vmatpush2.msra.mxu0 0.0
    %288 = vmatprep.subr.mxu0 0.0
    %289 = vmatpush2.msra.mxu0 0.0
    %290 = vmatprep.subr.mxu0 0.0
    %291 = vmatpush2.msra.mxu0 0.0
    %292 = vmatprep.subr.mxu0 0.0
    %293 = vmatpush2.msra.mxu0 0.0
    %294 = vmatprep.subr.mxu0 0.0
    %295 = vmatpush2.msra.mxu0 0.0
    %296 = vmatprep.subr.mxu0 0.0
    %297 = vmatpush2.msra.mxu0 0.0
    %298 = vmatprep.subr.mxu0 0.0
    %299 = vmatpush2.msra.mxu0 0.0
    %300 = vmatprep.subr.mxu0 0.0
    %301 = vmatpush2.msra.mxu0 0.0
    %302 = vmatprep.subr.mxu0 0.0
    %303 = vmatpush2.msra.mxu0 0.0
    %304 = vmatprep.subr.mxu0 0.0
    %305 = vmatpush2.msra.mxu0 0.0
    %306 = vmatprep.subr.mxu0 0.0
    %307 = vmatpush2.msra.mxu0 0.0
    %308 = vmatprep.subr.mxu0 0.0
    %309 = vmatpush2.msra.mxu0 0.0
    %310 = vmatprep.mubr.f32.mxu0 0.0
    %311 = vmatmul.mubr.f32.gmra.mxu0 %v166
    %v312 = vpop.f32.mrf.mxu0
    %v313 = vadd.f32 0.0, %v312
    %v314 = vpop.f32.mrf.mxu0
    %315 = vdwg.mxu0
    %316 = vrot.lane.b32.xlu0 %v235, 64
    %v317 = vpop.permute.xlu0 %316
    %v318 = vadd.f32 %v235, %v317
    %319 = vrot.lane.b32.xlu0 %v313, 64
    %v320 = vpop.permute.xlu0 %319
    %v321 = vadd.f32 %v313, %v320
    %322 = vrot.lane.b32.xlu0 %v318, 32
    %v323 = vpop.permute.xlu0 %322
    %v324 = vadd.f32 %v318, %v323
    %325 = vrot.lane.b32.xlu0 %v321, 32
    %v326 = vpop.permute.xlu0 %325
    %v327 = vadd.f32 %v321, %v326
    %v328 = vmul.f32 %v324, 0.00390625
    %v329 = vmul.f32 %v327, 0.00390625
    %v330 = vmul.f32 %v328, %v328
    %v331 = vsub.f32 %v329, %v330
    %v332 = vmax.f32 %v331, 0.0
    %v333 = vadd.f32 %v332, 1e-05
    %v334 = vrsqrt.pop %v333
    %v335 = vmul.f32 %v49, %v334
    %v336 = vmul.f32 %v328, %v335
    %v337 = vsub.f32 %v50, %v336
    %v338 = vlaneseq
    %v339 = vshrl.u32 %v338, 7
    %v340 = vsub.s32 0, %v339
    %v341 = vrot.slane %v335, %v340
    %v342 = vmul.f32 %v156, %v341
    %v343 = vmul.f32 %v157, %v341
    %v344 = vmul.f32 %v158, %v341
    %v345 = vmul.f32 %v159, %v341
    %v346 = vmul.f32 %v160, %v341
    %v347 = vmul.f32 %v161, %v341
    %v348 = vmul.f32 %v162, %v341
    %v349 = vmul.f32 %v163, %v341
    %v350 = vlaneseq
    %v351 = vshrl.u32 %v350, 7
    %v352 = vsub.s32 0, %v351
    %v353 = vrot.slane %v337, %v352
    %v354 = vadd.f32 %v342, %v353
    %v355 = vadd.f32 %v343, %v353
    %v356 = vadd.f32 %v344, %v353
    %v357 = vadd.f32 %v345, %v353
    %v358 = vadd.f32 %v346, %v353
    %v359 = vadd.f32 %v347, %v353
    %v360 = vadd.f32 %v348, %v353
    %v361 = vadd.f32 %v349, %v353
    %v362 = vld [vmem:[#allocation2 + $0x90] sm:$0xff]
    %v363 = vld [vmem:[#allocation2 + $0x98] sm:$0xff]
    %v364 = vld [vmem:[#allocation2 + $0xa0] sm:$0xff]
    %v365 = vld [vmem:[#allocation2 + $0xa8] sm:$0xff]
    %v366 = vld [vmem:[#allocation2 + $0xb0] sm:$0xff]
    %v367 = vld [vmem:[#allocation2 + $0xb8] sm:$0xff]
    %v368 = vld [vmem:[#allocation2 + $0xc0] sm:$0xff]
    %v369 = vld [vmem:[#allocation2 + $0xc8] sm:$0xff]
    %v370 = vld [vmem:[#allocation2 + $0xd0] sm:$0xff]
    %v371 = vld [vmem:[#allocation2 + $0xd8] sm:$0xff]
    %v372 = vld [vmem:[#allocation2 + $0xe0] sm:$0xff]
    %v373 = vld [vmem:[#allocation2 + $0xe8] sm:$0xff]
    %v374 = vld [vmem:[#allocation2 + $0xf0] sm:$0xff]
    %v375 = vld [vmem:[#allocation2 + $0xf8] sm:$0xff]
    %v376 = vld [vmem:[#allocation2 + $0x100] sm:$0xff]
    %v377 = vld [vmem:[#allocation2 + $0x108] sm:$0xff]
    %v378 = vld [vmem:[#allocation2 + $0x110] sm:$0x1]
    %v379 = vld [vmem:[#allocation2 + $0x118] sm:$0x1]
    %380 = vmatprep.subr.mxu0 0.0
    %381 = vmatpush1.msra.mxu0 %v377
    %382 = vmatprep.subr.mxu0 0.0
    %383 = vmatpush1.msra.mxu0 %v376
    %384 = vmatprep.subr.mxu0 0.0
    %385 = vmatpush1.msra.mxu0 %v375
    %386 = vmatprep.subr.mxu0 0.0
    %387 = vmatpush1.msra.mxu0 %v374
    %388 = vmatprep.subr.mxu0 0.0
    %389 = vmatpush1.msra.mxu0 %v373
    %390 = vmatprep.subr.mxu0 0.0
    %391 = vmatpush1.msra.mxu0 %v372
    %392 = vmatprep.subr.mxu0 0.0
    %393 = vmatpush1.msra.mxu0 %v371
    %394 = vmatprep.subr.mxu0 0.0
    %395 = vmatpush1.msra.mxu0 %v370
    %396 = vmatprep.subr.mxu0 0.0
    %397 = vmatpush1.msra.mxu0 %v369
    %398 = vmatprep.subr.mxu0 0.0
    %399 = vmatpush1.msra.mxu0 %v368
    %400 = vmatprep.subr.mxu0 0.0
    %401 = vmatpush1.msra.mxu0 %v367
    %402 = vmatprep.subr.mxu0 0.0
    %403 = vmatpush1.msra.mxu0 %v366
    %404 = vmatprep.subr.mxu0 0.0
    %405 = vmatpush1.msra.mxu0 %v365
    %406 = vmatprep.subr.mxu0 0.0
    %407 = vmatpush1.msra.mxu0 %v364
    %408 = vmatprep.subr.mxu0 0.0
    %409 = vmatpush1.msra.mxu0 %v363
    %410 = vmatprep.subr.mxu0 0.0
    %411 = vmatpush1.msra.mxu0 %v362
    %412 = vmatprep.subr.mxu0 0.0
    %413 = vmatpush2.msra.mxu0 0.0
    %414 = vmatprep.subr.mxu0 0.0
    %415 = vmatpush2.msra.mxu0 0.0
    %416 = vmatprep.subr.mxu0 0.0
    %417 = vmatpush2.msra.mxu0 0.0
    %418 = vmatprep.subr.mxu0 0.0
    %419 = vmatpush2.msra.mxu0 0.0
    %420 = vmatprep.subr.mxu0 0.0
    %421 = vmatpush2.msra.mxu0 0.0
    %422 = vmatprep.subr.mxu0 0.0
    %423 = vmatpush2.msra.mxu0 0.0
    %424 = vmatprep.subr.mxu0 0.0
    %425 = vmatpush2.msra.mxu0 0.0
    %426 = vmatprep.subr.mxu0 0.0
    %427 = vmatpush2.msra.mxu0 0.0
    %428 = vmatprep.subr.mxu0 0.0
    %429 = vmatpush2.msra.mxu0 0.0
    %430 = vmatprep.subr.mxu0 0.0
    %431 = vmatpush2.msra.mxu0 0.0
    %432 = vmatprep.subr.mxu0 0.0
    %433 = vmatpush2.msra.mxu0 0.0
    %434 = vmatprep.subr.mxu0 0.0
    %435 = vmatpush2.msra.mxu0 0.0
    %436 = vmatprep.subr.mxu0 0.0
    %437 = vmatpush2.msra.mxu0 0.0
    %438 = vmatprep.subr.mxu0 0.0
    %439 = vmatpush2.msra.mxu0 0.0
    %440 = vmatprep.subr.mxu0 0.0
    %441 = vmatpush2.msra.mxu0 0.0
    %442 = vmatprep.subr.mxu0 0.0
    %443 = vmatpush2.msra.mxu0 0.0
    %444 = vmatprep.mubr.f32.mxu0 0.0
    %445 = vmatmul.mubr.f32.gmra.mxu0 %v354
    %v446 = vpop.f32.mrf.mxu0
    %v447 = vadd.f32 0.0, %v446
    %v448 = vpop.f32.mrf.mxu0
    %449 = vmatprep.mubr.f32.mxu0 0.0
    %450 = vmatmul.mubr.f32.gmra.mxu0 %v355
    %v451 = vpop.f32.mrf.mxu0
    %v452 = vadd.f32 0.0, %v451
    %v453 = vpop.f32.mrf.mxu0
    %454 = vmatprep.mubr.f32.mxu0 0.0
    %455 = vmatmul.mubr.f32.gmra.mxu0 %v356
    %v456 = vpop.f32.mrf.mxu0
    %v457 = vadd.f32 0.0, %v456
    %v458 = vpop.f32.mrf.mxu0
    %459 = vmatprep.mubr.f32.mxu0 0.0
    %460 = vmatmul.mubr.f32.gmra.mxu0 %v357
    %v461 = vpop.f32.mrf.mxu0
    %v462 = vadd.f32 0.0, %v461
    %v463 = vpop.f32.mrf.mxu0
    %464 = vmatprep.mubr.f32.mxu0 0.0
    %465 = vmatmul.mubr.f32.gmra.mxu0 %v358
    %v466 = vpop.f32.mrf.mxu0
    %v467 = vadd.f32 0.0, %v466
    %v468 = vpop.f32.mrf.mxu0
    %469 = vmatprep.mubr.f32.mxu0 0.0
    %470 = vmatmul.mubr.f32.gmra.mxu0 %v359
    %v471 = vpop.f32.mrf.mxu0
    %v472 = vadd.f32 0.0, %v471
    %v473 = vpop.f32.mrf.mxu0
    %474 = vmatprep.mubr.f32.mxu0 0.0
    %475 = vmatmul.mubr.f32.gmra.mxu0 %v360
    %v476 = vpop.f32.mrf.mxu0
    %v477 = vadd.f32 0.0, %v476
    %v478 = vpop.f32.mrf.mxu0
    %479 = vmatprep.mubr.f32.mxu0 0.0
    %480 = vmatmul.mubr.f32.gmra.mxu0 %v361
    %v481 = vpop.f32.mrf.mxu0
    %v482 = vadd.f32 0.0, %v481
    %v483 = vpop.f32.mrf.mxu0
    %484 = vdwg.mxu0
    %v485 = vmax.f32 %v447, 0.0
    %v486 = vmax.f32 %v452, 0.0
    %v487 = vmax.f32 %v457, 0.0
    %v488 = vmax.f32 %v462, 0.0
    %v489 = vmax.f32 %v467, 0.0
    %v490 = vmax.f32 %v472, 0.0
    %v491 = vmax.f32 %v477, 0.0
    %v492 = vmax.f32 %v482, 0.0
    %493 = vmatprep.subr.mxu0 0.0
    %494 = vmatpush1.msra.mxu0 0.0
    %495 = vmatprep.subr.mxu0 0.0
    %496 = vmatpush1.msra.mxu0 0.0
    %497 = vmatprep.subr.mxu0 0.0
    %498 = vmatpush1.msra.mxu0 0.0
    %499 = vmatprep.subr.mxu0 0.0
    %500 = vmatpush1.msra.mxu0 0.0
    %501 = vmatprep.subr.mxu0 0.0
    %502 = vmatpush1.msra.mxu0 0.0
    %503 = vmatprep.subr.mxu0 0.0
    %504 = vmatpush1.msra.mxu0 0.0
    %505 = vmatprep.subr.mxu0 0.0
    %506 = vmatpush1.msra.mxu0 0.0
    %507 = vmatprep.subr.mxu0 0.0
    %508 = vmatpush1.msra.mxu0 0.0
    %509 = vmatprep.subr.mxu0 0.0
    %510 = vmatpush1.msra.mxu0 %v492
    %511 = vmatprep.subr.mxu0 0.0
    %512 = vmatpush1.msra.mxu0 %v491
    %513 = vmatprep.subr.mxu0 0.0
    %514 = vmatpush1.msra.mxu0 %v490
    %515 = vmatprep.subr.mxu0 0.0
    %516 = vmatpush1.msra.mxu0 %v489
    %517 = vmatprep.subr.mxu0 0.0
    %518 = vmatpush1.msra.mxu0 %v488
    %519 = vmatprep.subr.mxu0 0.0
    %520 = vmatpush1.msra.mxu0 %v487
    %521 = vmatprep.subr.mxu0 0.0
    %522 = vmatpush1.msra.mxu0 %v486
    %523 = vmatprep.subr.mxu0 0.0
    %524 = vmatpush1.msra.mxu0 %v485
    %525 = vmatprep.subr.mxu0 0.0
    %526 = vmatpush2.msra.mxu0 0.0
    %527 = vmatprep.subr.mxu0 0.0
    %528 = vmatpush2.msra.mxu0 0.0
    %529 = vmatprep.subr.mxu0 0.0
    %530 = vmatpush2.msra.mxu0 0.0
    %531 = vmatprep.subr.mxu0 0.0
    %532 = vmatpush2.msra.mxu0 0.0
    %533 = vmatprep.subr.mxu0 0.0
    %534 = vmatpush2.msra.mxu0 0.0
    %535 = vmatprep.subr.mxu0 0.0
    %536 = vmatpush2.msra.mxu0 0.0
    %537 = vmatprep.subr.mxu0 0.0
    %538 = vmatpush2.msra.mxu0 0.0
    %539 = vmatprep.subr.mxu0 0.0
    %540 = vmatpush2.msra.mxu0 0.0
    %541 = vmatprep.subr.mxu0 0.0
    %542 = vmatpush2.msra.mxu0 0.0
    %543 = vmatprep.subr.mxu0 0.0
    %544 = vmatpush2.msra.mxu0 0.0
    %545 = vmatprep.subr.mxu0 0.0
    %546 = vmatpush2.msra.mxu0 0.0
    %547 = vmatprep.subr.mxu0 0.0
    %548 = vmatpush2.msra.mxu0 0.0
    %549 = vmatprep.subr.mxu0 0.0
    %550 = vmatpush2.msra.mxu0 0.0
    %551 = vmatprep.subr.mxu0 0.0
    %552 = vmatpush2.msra.mxu0 0.0
    %553 = vmatprep.subr.mxu0 0.0
    %554 = vmatpush2.msra.mxu0 0.0
    %555 = vmatprep.subr.mxu0 0.0
    %556 = vmatpush2.msra.mxu0 0.0
    %557 = vmatprep.mubr.f32.mxu0 0.0
    %558 = vmatmul.mubr.f32.gmra.mxu0 %v166
    %v559 = vpop.f32.mrf.mxu0
    %v560 = vadd.f32 0.0, %v559
    %v561 = vpop.f32.mrf.mxu0
    %562 = vdwg.mxu0
    %v563 = vmul.f32 %v485, %v485
    %v564 = vmul.f32 %v486, %v486
    %v565 = vmul.f32 %v487, %v487
    %v566 = vmul.f32 %v488, %v488
    %v567 = vmul.f32 %v489, %v489
    %v568 = vmul.f32 %v490, %v490
    %v569 = vmul.f32 %v491, %v491
    %v570 = vmul.f32 %v492, %v492
    %571 = vmatprep.subr.mxu0 0.0
    %572 = vmatpush1.msra.mxu0 0.0
    %573 = vmatprep.subr.mxu0 0.0
    %574 = vmatpush1.msra.mxu0 0.0
    %575 = vmatprep.subr.mxu0 0.0
    %576 = vmatpush1.msra.mxu0 0.0
    %577 = vmatprep.subr.mxu0 0.0
    %578 = vmatpush1.msra.mxu0 0.0
    %579 = vmatprep.subr.mxu0 0.0
    %580 = vmatpush1.msra.mxu0 0.0
    %581 = vmatprep.subr.mxu0 0.0
    %582 = vmatpush1.msra.mxu0 0.0
    %583 = vmatprep.subr.mxu0 0.0
    %584 = vmatpush1.msra.mxu0 0.0
    %585 = vmatprep.subr.mxu0 0.0
    %586 = vmatpush1.msra.mxu0 0.0
    %587 = vmatprep.subr.mxu0 0.0
    %588 = vmatpush1.msra.mxu0 %v570
    %589 = vmatprep.subr.mxu0 0.0
    %590 = vmatpush1.msra.mxu0 %v569
    %591 = vmatprep.subr.mxu0 0.0
    %592 = vmatpush1.msra.mxu0 %v568
    %593 = vmatprep.subr.mxu0 0.0
    %594 = vmatpush1.msra.mxu0 %v567
    %595 = vmatprep.subr.mxu0 0.0
    %596 = vmatpush1.msra.mxu0 %v566
    %597 = vmatprep.subr.mxu0 0.0
    %598 = vmatpush1.msra.mxu0 %v565
    %599 = vmatprep.subr.mxu0 0.0
    %600 = vmatpush1.msra.mxu0 %v564
    %601 = vmatprep.subr.mxu0 0.0
    %602 = vmatpush1.msra.mxu0 %v563
    %603 = vmatprep.subr.mxu0 0.0
    %604 = vmatpush2.msra.mxu0 0.0
    %605 = vmatprep.subr.mxu0 0.0
    %606 = vmatpush2.msra.mxu0 0.0
    %607 = vmatprep.subr.mxu0 0.0
    %608 = vmatpush2.msra.mxu0 0.0
    %609 = vmatprep.subr.mxu0 0.0
    %610 = vmatpush2.msra.mxu0 0.0
    %611 = vmatprep.subr.mxu0 0.0
    %612 = vmatpush2.msra.mxu0 0.0
    %613 = vmatprep.subr.mxu0 0.0
    %614 = vmatpush2.msra.mxu0 0.0
    %615 = vmatprep.subr.mxu0 0.0
    %616 = vmatpush2.msra.mxu0 0.0
    %617 = vmatprep.subr.mxu0 0.0
    %618 = vmatpush2.msra.mxu0 0.0
    %619 = vmatprep.subr.mxu0 0.0
    %620 = vmatpush2.msra.mxu0 0.0
    %621 = vmatprep.subr.mxu0 0.0
    %622 = vmatpush2.msra.mxu0 0.0
    %623 = vmatprep.subr.mxu0 0.0
    %624 = vmatpush2.msra.mxu0 0.0
    %625 = vmatprep.subr.mxu0 0.0
    %626 = vmatpush2.msra.mxu0 0.0
    %627 = vmatprep.subr.mxu0 0.0
    %628 = vmatpush2.msra.mxu0 0.0
    %629 = vmatprep.subr.mxu0 0.0
    %630 = vmatpush2.msra.mxu0 0.0
    %631 = vmatprep.subr.mxu0 0.0
    %632 = vmatpush2.msra.mxu0 0.0
    %633 = vmatprep.subr.mxu0 0.0
    %634 = vmatpush2.msra.mxu0 0.0
    %635 = vmatprep.mubr.f32.mxu0 0.0
    %636 = vmatmul.mubr.f32.gmra.mxu0 %v166
    %v637 = vpop.f32.mrf.mxu0
    %v638 = vadd.f32 0.0, %v637
    %v639 = vpop.f32.mrf.mxu0
    %640 = vdwg.mxu0
    %641 = vrot.lane.b32.xlu0 %v560, 64
    %v642 = vpop.permute.xlu0 %641
    %v643 = vadd.f32 %v560, %v642
    %644 = vrot.lane.b32.xlu0 %v638, 64
    %v645 = vpop.permute.xlu0 %644
    %v646 = vadd.f32 %v638, %v645
    %647 = vrot.lane.b32.xlu0 %v643, 32
    %v648 = vpop.permute.xlu0 %647
    %v649 = vadd.f32 %v643, %v648
    %650 = vrot.lane.b32.xlu0 %v646, 32
    %v651 = vpop.permute.xlu0 %650
    %v652 = vadd.f32 %v646, %v651
    %v653 = vmul.f32 %v649, 0.00390625
    %v654 = vmul.f32 %v652, 0.00390625
    %v655 = vmul.f32 %v653, %v653
    %v656 = vsub.f32 %v654, %v655
    %v657 = vmax.f32 %v656, 0.0
    %v658 = vadd.f32 %v657, 1e-05
    %v659 = vrsqrt.pop %v658
    %v660 = vmul.f32 %v378, %v659
    %v661 = vmul.f32 %v653, %v660
    %v662 = vsub.f32 %v379, %v661
    %v663 = vlaneseq
    %v664 = vshrl.u32 %v663, 7
    %v665 = vsub.s32 0, %v664
    %v666 = vrot.slane %v660, %v665
    %v667 = vmul.f32 %v485, %v666
    %v668 = vmul.f32 %v486, %v666
    %v669 = vmul.f32 %v487, %v666
    %v670 = vmul.f32 %v488, %v666
    %v671 = vmul.f32 %v489, %v666
    %v672 = vmul.f32 %v490, %v666
    %v673 = vmul.f32 %v491, %v666
    %v674 = vmul.f32 %v492, %v666
    %v675 = vlaneseq
    %v676 = vshrl.u32 %v675, 7
    %v677 = vsub.s32 0, %v676
    %v678 = vrot.slane %v662, %v677
    %v679 = vadd.f32 %v667, %v678
    %v680 = vadd.f32 %v668, %v678
    %v681 = vadd.f32 %v669, %v678
    %v682 = vadd.f32 %v670, %v678
    %v683 = vadd.f32 %v671, %v678
    %v684 = vadd.f32 %v672, %v678
    %v685 = vadd.f32 %v673, %v678
    %v686 = vadd.f32 %v674, %v678
    %v687 = vld [vmem:[#allocation2 + $0x120] sm:$0xff]
    %v688 = vld [vmem:[#allocation2 + $0x128] sm:$0xff]
    %v689 = vld [vmem:[#allocation2 + $0x130] sm:$0xff]
    %v690 = vld [vmem:[#allocation2 + $0x138] sm:$0xff]
    %v691 = vld [vmem:[#allocation2 + $0x140] sm:$0xff]
    %v692 = vld [vmem:[#allocation2 + $0x148] sm:$0xff]
    %v693 = vld [vmem:[#allocation2 + $0x150] sm:$0xff]
    %v694 = vld [vmem:[#allocation2 + $0x158] sm:$0xff]
    %v695 = vld [vmem:[#allocation2 + $0x160] sm:$0xff]
    %v696 = vld [vmem:[#allocation2 + $0x168] sm:$0xff]
    %v697 = vld [vmem:[#allocation2 + $0x170] sm:$0xff]
    %v698 = vld [vmem:[#allocation2 + $0x178] sm:$0xff]
    %v699 = vld [vmem:[#allocation2 + $0x180] sm:$0xff]
    %v700 = vld [vmem:[#allocation2 + $0x188] sm:$0xff]
    %v701 = vld [vmem:[#allocation2 + $0x190] sm:$0xff]
    %v702 = vld [vmem:[#allocation2 + $0x198] sm:$0xff]
    %v703 = vld [vmem:[#allocation2 + $0x1a0] sm:$0x1]
    %v704 = vlaneseq
    %v705 = vshrl.u32 %v704, 7
    %v706 = vsub.s32 0, %v705
    %v707 = vrot.slane %v703, %v706
    %708 = vmatprep.subr.mxu0 0.0
    %709 = vmatpush1.msra.mxu0 %v702
    %710 = vmatprep.subr.mxu0 0.0
    %711 = vmatpush1.msra.mxu0 %v701
    %712 = vmatprep.subr.mxu0 0.0
    %713 = vmatpush1.msra.mxu0 %v700
    %714 = vmatprep.subr.mxu0 0.0
    %715 = vmatpush1.msra.mxu0 %v699
    %716 = vmatprep.subr.mxu0 0.0
    %717 = vmatpush1.msra.mxu0 %v698
    %718 = vmatprep.subr.mxu0 0.0
    %719 = vmatpush1.msra.mxu0 %v697
    %720 = vmatprep.subr.mxu0 0.0
    %721 = vmatpush1.msra.mxu0 %v696
    %722 = vmatprep.subr.mxu0 0.0
    %723 = vmatpush1.msra.mxu0 %v695
    %724 = vmatprep.subr.mxu0 0.0
    %725 = vmatpush1.msra.mxu0 %v694
    %726 = vmatprep.subr.mxu0 0.0
    %727 = vmatpush1.msra.mxu0 %v693
    %728 = vmatprep.subr.mxu0 0.0
    %729 = vmatpush1.msra.mxu0 %v692
    %730 = vmatprep.subr.mxu0 0.0
    %731 = vmatpush1.msra.mxu0 %v691
    %732 = vmatprep.subr.mxu0 0.0
    %733 = vmatpush1.msra.mxu0 %v690
    %734 = vmatprep.subr.mxu0 0.0
    %735 = vmatpush1.msra.mxu0 %v689
    %736 = vmatprep.subr.mxu0 0.0
    %737 = vmatpush1.msra.mxu0 %v688
    %738 = vmatprep.subr.mxu0 0.0
    %739 = vmatpush1.msra.mxu0 %v687
    %740 = vmatprep.subr.mxu0 0.0
    %741 = vmatpush2.msra.mxu0 0.0
    %742 = vmatprep.subr.mxu0 0.0
    %743 = vmatpush2.msra.mxu0 0.0
    %744 = vmatprep.subr.mxu0 0.0
    %745 = vmatpush2.msra.mxu0 0.0
    %746 = vmatprep.subr.mxu0 0.0
    %747 = vmatpush2.msra.mxu0 0.0
    %748 = vmatprep.subr.mxu0 0.0
    %749 = vmatpush2.msra.mxu0 0.0
    %750 = vmatprep.subr.mxu0 0.0
    %751 = vmatpush2.msra.mxu0 0.0
    %752 = vmatprep.subr.mxu0 0.0
    %753 = vmatpush2.msra.mxu0 0.0
    %754 = vmatprep.subr.mxu0 0.0
    %755 = vmatpush2.msra.mxu0 0.0
    %756 = vmatprep.subr.mxu0 0.0
    %757 = vmatpush2.msra.mxu0 0.0
    %758 = vmatprep.subr.mxu0 0.0
    %759 = vmatpush2.msra.mxu0 0.0
    %760 = vmatprep.subr.mxu0 0.0
    %761 = vmatpush2.msra.mxu0 0.0
    %762 = vmatprep.subr.mxu0 0.0
    %763 = vmatpush2.msra.mxu0 0.0
    %764 = vmatprep.subr.mxu0 0.0
    %765 = vmatpush2.msra.mxu0 0.0
    %766 = vmatprep.subr.mxu0 0.0
    %767 = vmatpush2.msra.mxu0 0.0
    %768 = vmatprep.subr.mxu0 0.0
    %769 = vmatpush2.msra.mxu0 0.0
    %770 = vmatprep.subr.mxu0 0.0
    %771 = vmatpush2.msra.mxu0 0.0
    %772 = vmatprep.mubr.f32.mxu0 0.0
    %773 = vmatmul.mubr.f32.gmra.mxu0 %v679
    %v774 = vpop.f32.mrf.mxu0
    %v775 = vadd.f32 %v707, %v774
    %v776 = vpop.f32.mrf.mxu0
    %777 = vmatprep.mubr.f32.mxu0 0.0
    %778 = vmatmul.mubr.f32.gmra.mxu0 %v680
    %v779 = vpop.f32.mrf.mxu0
    %v780 = vadd.f32 %v707, %v779
    %v781 = vpop.f32.mrf.mxu0
    %782 = vmatprep.mubr.f32.mxu0 0.0
    %783 = vmatmul.mubr.f32.gmra.mxu0 %v681
    %v784 = vpop.f32.mrf.mxu0
    %v785 = vadd.f32 %v707, %v784
    %v786 = vpop.f32.mrf.mxu0
    %787 = vmatprep.mubr.f32.mxu0 0.0
    %788 = vmatmul.mubr.f32.gmra.mxu0 %v682
    %v789 = vpop.f32.mrf.mxu0
    %v790 = vadd.f32 %v707, %v789
    %v791 = vpop.f32.mrf.mxu0
    %792 = vmatprep.mubr.f32.mxu0 0.0
    %793 = vmatmul.mubr.f32.gmra.mxu0 %v683
    %v794 = vpop.f32.mrf.mxu0
    %v795 = vadd.f32 %v707, %v794
    %v796 = vpop.f32.mrf.mxu0
    %797 = vmatprep.mubr.f32.mxu0 0.0
    %798 = vmatmul.mubr.f32.gmra.mxu0 %v684
    %v799 = vpop.f32.mrf.mxu0
    %v800 = vadd.f32 %v707, %v799
    %v801 = vpop.f32.mrf.mxu0
    %802 = vmatprep.mubr.f32.mxu0 0.0
    %803 = vmatmul.mubr.f32.gmra.mxu0 %v685
    %v804 = vpop.f32.mrf.mxu0
    %v805 = vadd.f32 %v707, %v804
    %v806 = vpop.f32.mrf.mxu0
    %807 = vmatprep.mubr.f32.mxu0 0.0
    %808 = vmatmul.mubr.f32.gmra.mxu0 %v686
    %v809 = vpop.f32.mrf.mxu0
    %v810 = vadd.f32 %v707, %v809
    %v811 = vpop.f32.mrf.mxu0
    %812 = vdwg.mxu0
    %813 = vst [vmem:[%s2] sm:$0xff] %v775
    %814 = vst [vmem:[%s2 + $0x8] sm:$0xff] %v780
    %815 = vst [vmem:[%s2 + $0x10] sm:$0xff] %v785
    %816 = vst [vmem:[%s2 + $0x18] sm:$0xff] %v790
    %817 = vst [vmem:[%s2 + $0x20] sm:$0xff] %v795
    %818 = vst [vmem:[%s2 + $0x28] sm:$0xff] %v800
    %819 = vst [vmem:[%s2 + $0x30] sm:$0xff] %v805
    %820 = vst [vmem:[%s2 + $0x38] sm:$0xff] %v810
    // Predicated region
    $region14: #{node_decoder_forward.1} parent=1 // pred_check
      _
    $region15: #{node_decoder_forward.1} parent=1 // pred_check_branch
      %822 = sbr.rel (0) target = $region17
    $region16: #{node_decoder_forward.1} parent=1 // pred_region
      _
    $region17: #{node_decoder_forward.1} parent=1 // pred_fallthru
      _
    // Predicated region
    $region18: #{node_decoder_forward.1} parent=1 // pred_check
      _
    $region19: #{node_decoder_forward.1} parent=1 // pred_check_branch
      %824 = sbr.rel (0) target = $region21
    $region20: #{node_decoder_forward.1} parent=1 // pred_region
      _
    $region21: #{node_decoder_forward.1} parent=1 // pred_fallthru
      _
    %825 = vsyncpa [#allocation3], 1

</llo_original>
